<compile_context>
chip_gen: v7x
topology: tpu7x:2x2x1
jax: 0.10.0
libtpu: 0.0.40
codegen_flags: <defaults>
</compile_context>

<pallas_src>
import functools

import jax
import jax.numpy as jnp
from jax import lax
from jax.experimental import pallas as pl
from jax.experimental.pallas import tpu as pltpu


# ----------------------------- device heuristics ----------------------------

def _tpu_kind():
    try:
        return jax.devices()[0].device_kind.lower()
    except Exception:
        return ""


def _hw_config():
    """Returns (vmem_limit_bytes, force_multi_tile_grid, use_bf16_exp)."""
    kind = _tpu_kind()
    if "v7" in kind or "7x" in kind:
        # v7x: 64 MiB VMEM / TensorCore, 2 TCs -> modest scoped limit and make
        # sure the row-tile grid has >= 2 steps for megacore sharding.
        return 40 * 1024 * 1024, True, True
    if "v6" in kind:
        return 64 * 1024 * 1024, False, True
    if "v5" in kind:
        # v5e: 128 MiB VMEM but no bf16 EUP -> f32 exp, allow big tiles.
        return 96 * 1024 * 1024, False, False
    return 32 * 1024 * 1024, False, False      # unknown: conservative


# ------------------------------- kernel -------------------------------------

def _gat_attn_kernel(e_src_ref, e_dst_ref, adj_ref, hblk_ref, bias_ref, o_ref,
                     *, heads, cp, np_pad, concat, apply_relu, fold_col,
                     use_bf16_exp, approx_recip, negative_slope=0.2):
    """Masked-softmax attention + aggregation for one tile of destination rows.

    e_src_ref : [heads, Np]          f32  att_src . h_j   (grid-invariant)
    e_dst_ref : [TM, heads]          f32  att_dst . h_i   (row tile)
    adj_ref   : [TM, Np]             int8 adj[i, j] = 1 iff edge j -> i
    hblk_ref  : [heads*Np, heads*Cp] bf16 block-diagonal projected features,
                with a 1.0 planted at column hd*Cp+fold_col of block hd so the
                softmax denominator falls out of the aggregation matmul.
    bias_ref  : [1, Fout_p]          f32
    o_ref     : [TM, Fout_p]         bf16 (hidden layers) / f32 (final layer)
    """
    hcp = heads * cp
    edge = adj_ref[...] != 0                                    # [TM, Np]
    e_src = e_src_ref[...]                                      # [heads, Np]
    e_dst = e_dst_ref[...]                                      # [TM, heads]

    acc = None
    denoms = []
    for hd in range(heads):                                     # static (1/2)
        # logits[i, j] = LeakyReLU(e_dst[i] + e_src[j]) for edge j -> i.
        logits = e_dst[:, hd:hd + 1] + e_src[hd:hd + 1, :]      # [TM, Np]
        logits = jnp.where(logits >= 0, logits, negative_slope * logits)
        masked = jnp.where(edge, logits, -1e30)                 # softmax mask
        m = jnp.max(masked, axis=1, keepdims=True)              # XLU max
        z = masked - m                                          # <= 0, f32
        if use_bf16_exp:            # v6e/v7x: bf16 EUP exp, 2 elems per lane
            p = jnp.exp(z.astype(jnp.bfloat16))
        else:                       # v5e: EUP has no bf16
            p = jnp.exp(z)
        if fold_col is None:        # no spare padded column -> explicit sum
            denoms.append(jnp.sum(p.astype(jnp.float32), axis=1, keepdims=True))
        # Aggregate on the MXU against head hd's block of H_blk.  The block is
        # zero outside columns [hd*Cp, hd*Cp + Cp), so accumulating the
        # full-width [TM,Np] x [Np,H*Cp] products directly yields the
        # concatenated head layout (full MXU output-lane width, no output
        # concat) with f32 accumulation.
        part = jnp.dot(p.astype(jnp.bfloat16),
                       hblk_ref[hd * np_pad:(hd + 1) * np_pad, :],
                       preferred_element_type=jnp.float32)      # [TM, H*Cp]
        acc = part if acc is None else acc + part

    # Per-head softmax denominators (planted ones-column of H_blk, or fallback).
    invs = []
    for hd in range(heads):
        if fold_col is not None:
            d = acc[:, hd * cp + fold_col:hd * cp + fold_col + 1]   # [TM, 1]
        else:
            d = denoms[hd]
        invs.append(pl.reciprocal(jnp.maximum(d, 1e-20), approx=approx_recip))

    if concat:
        col = lax.broadcasted_iota(jnp.int32, (1, hcp), 1)
        inv_full = invs[0]
        for hd in range(1, heads):
            inv_full = jnp.where(col >= hd * cp, invs[hd], inv_full)
        out = acc * inv_full                                     # [TM, H*Cp]
        if fold_col is not None:        # re-zero the denominator columns
            bad = col == fold_col
            for hd in range(1, heads):
                bad = jnp.logical_or(bad, col == hd * cp + fold_col)
            out = jnp.where(bad, 0.0, out)
    else:
        out = acc[:, 0:cp] * invs[0]
        for hd in range(1, heads):
            out = out + acc[:, hd * cp:(hd + 1) * cp] * invs[hd]
        if heads > 1:
            out = out * (1.0 / float(heads))
        if fold_col is not None:
            col = lax.broadcasted_iota(jnp.int32, (1, cp), 1)
            out = jnp.where(col == fold_col, 0.0, out)

    out = out + bias_ref[...]
    if apply_relu:
        out = jnp.maximum(out, 0.0)
    o_ref[...] = out.astype(o_ref.dtype)                        # lane-dense


# ------------------------------ layer wrapper --------------------------------

def _choose_tm(np_pad, heads, hcp, fout_p, *, out_bytes, vmem_limit,
               force_multi):
    """Largest destination-row tile whose estimated VMEM footprint fits."""
    budget = int(vmem_limit * 0.75)
    # Grid-invariant residents: H_blk (bf16), e_src (f32), bias.
    resident = heads * np_pad * hcp * 2 + heads * np_pad * 4 + fout_p * 4
    for tm in (1024, 512, 256, 128, 64, 32, 16, 8):
        if np_pad % tm:
            continue
        if force_multi and np_pad // tm < 2:
            continue                  # keep >= 2 grid steps for v7x megacore
        # Double-buffered streams (adj int8, e_dst, out tile) + live working
        # set (~5 f32 [TM,Np] planes for logits/mask/exp) + the [TM,H*Cp] acc.
        streams = 2 * (tm * np_pad + tm * heads * 4 + tm * fout_p * out_bytes)
        live = 5 * tm * np_pad * 4 + tm * hcp * 4
        if resident + streams + live <= budget:
            return tm
    return 8


def _gat_conv_layer(x_bf, layer, adj, np_pad, *, last, vmem_limit, force_multi,
                    use_bf16_exp):
    heads, cp, c = layer["heads"], layer["cp"], layer["out_ch"]
    hcp = heads * cp
    concat = layer["concat"]
    fout_p = hcp if concat else cp
    out_dtype = jnp.float32 if last else jnp.bfloat16
    fold_col = c if c < cp else None          # spare zero-padded column?

    # --- hoisted per-layer precompute (ONCE per layer, not per row tile) -----
    # TODO(synk): the projection could be its own tiny Pallas matmul kernel;
    # a single XLA dot is already one MXU pass and keeps the wrapper simple.
    h = jnp.dot(x_bf, layer["w"], preferred_element_type=jnp.float32)  # [Np,HCp]
    e_src = lax.dot_general(layer["att_src"], h,
                            (((1,), (1,)), ((), ())))                  # [H, Np]
    e_dst = lax.dot_general(h, layer["att_dst"],
                            (((1,), (1,)), ((), ())))                  # [Np, H]
    h_bf = h.astype(jnp.bfloat16)

    # Block-diagonal aggregation matrix: head hd occupies rows [hd*Np, hd*Np+Np)
    # and columns [hd*Cp, hd*Cp+Cp); a 1.0 planted in a padded column of each
    # block makes the softmax denominator an extra output column of the matmul.
    if heads == 1:
        hblk = h_bf
    else:
        hblk = jnp.zeros((heads * np_pad, hcp), jnp.bfloat16)
        for hd in range(heads):
            hblk = hblk.at[hd * np_pad:(hd + 1) * np_pad,
                           hd * cp:(hd + 1) * cp].set(
                h_bf[:, hd * cp:(hd + 1) * cp])
    if fold_col is not None:
        for hd in range(heads):
            hblk = hblk.at[hd * np_pad:(hd + 1) * np_pad,
                           hd * cp + fold_col].set(1.0)

    tm = _choose_tm(np_pad, heads, hcp, fout_p, out_bytes=4 if last else 2,
                    vmem_limit=vmem_limit, force_multi=force_multi)

    kernel = functools.partial(
        _gat_attn_kernel, heads=heads, cp=cp, np_pad=np_pad, concat=concat,
        apply_relu=not last, fold_col=fold_col, use_bf16_exp=use_bf16_exp,
        approx_recip=not last)

    return pl.pallas_call(
        kernel,
        grid=(np_pad // tm,),
        in_specs=[
            pl.BlockSpec((heads, np_pad), lambda i: (0, 0)),        # e_src
            pl.BlockSpec((tm, heads), lambda i: (i, 0)),            # e_dst tile
            pl.BlockSpec((tm, np_pad), lambda i: (i, 0)),           # adj tile
            pl.BlockSpec((heads * np_pad, hcp), lambda i: (0, 0)),  # H_blk
            pl.BlockSpec((1, fout_p), lambda i: (0, 0)),            # bias
        ],
        out_specs=pl.BlockSpec((tm, fout_p), lambda i: (i, 0)),
        out_shape=jax.ShapeDtypeStruct((np_pad, fout_p), out_dtype),
        compiler_params=pltpu.CompilerParams(
            dimension_semantics=("parallel",),        # megacore row split
            vmem_limit_bytes=vmem_limit),
    )(e_src, e_dst, adj, hblk, layer["bias"])


# ------------------------------- glue (plain JAX) ---------------------------

def _round_up(v, m):
    return (v + m - 1) // m * m


def _glorot(key, shape):
    fan_in, fan_out = shape[0], shape[-1]
    limit = (6.0 / (fan_in + fan_out)) ** 0.5
    return jax.random.uniform(key, shape, jnp.float32, -limit, limit)


def init_gat_params(key, in_feats, out_feats, hidden_channels, layer_heads):
    """Reference (unpadded) parameters matching the torch module's layers."""
    num_layers = len(layer_heads)
    dims_in = [in_feats] + [hidden_channels * layer_heads[i - 1]
                            for i in range(1, num_layers)]
    dims_out = [hidden_channels] * (num_layers - 1) + [out_feats]
    params = []
    for li in range(num_layers):
        h, c = layer_heads[li], dims_out[li]
        concat = li < num_layers - 1
        key, kw, ks, kd = jax.random.split(key, 4)
        params.append(dict(
            w=_glorot(kw, (dims_in[li], h * c)),
            att_src=_glorot(ks, (h, c)),
            att_dst=_glorot(kd, (h, c)),
            bias=jnp.zeros((1, h * c if concat else c), jnp.float32),
            heads=h, out_ch=c, concat=concat))
    return params


def pad_gat_params(params, in_feats):
    """Zero-pad params to lane-dense layouts (per-head channels -> Cp).

    Padded rows/cols of W are zero so padded input columns never contribute;
    results equal the unpadded reference up to bf16 matmul rounding."""
    padded = []
    in_cols = jnp.arange(in_feats)          # real feature columns of the input
    fin_p = _round_up(in_feats, 128)
    for p in params:
        h, c, concat = p["heads"], p["out_ch"], p["concat"]
        assert 128 % h == 0, "heads must divide 128 for this padding scheme"
        cp = _round_up(c, 128 // h) if concat else _round_up(c, 128)
        hcp = h * cp
        fout_p = hcp if concat else cp

        w_pad = jnp.zeros((fin_p, hcp), jnp.float32)
        asrc = jnp.zeros((h, hcp), jnp.float32)
        adst = jnp.zeros((h, hcp), jnp.float32)
        bias = jnp.zeros((1, fout_p), jnp.float32)
        cols = jnp.arange(c)
        for hd in range(h):
            w_pad = w_pad.at[in_cols[:, None], hd * cp + cols[None, :]].set(
                p["w"][:, hd * c:(hd + 1) * c])
            asrc = asrc.at[hd, hd * cp:hd * cp + c].set(p["att_src"][hd])
            adst = adst.at[hd, hd * cp:hd * cp + c].set(p["att_dst"][hd])
            if concat:
                bias = bias.at[0, hd * cp:hd * cp + c].set(
                    p["bias"][0, hd * c:(hd + 1) * c])
        if not concat:
            bias = bias.at[0, :c].set(p["bias"][0, :c])

        padded.append(dict(
            w=w_pad.astype(jnp.bfloat16), att_src=asrc, att_dst=adst,
            bias=bias, heads=h, cp=cp, out_ch=c, concat=concat,
            fin_p=fin_p, fout_p=fout_p))

        # Next layer's real input columns live at hd*cp + (0..c-1).
        if concat:
            in_cols = jnp.concatenate([hd * cp + cols for hd in range(h)])
            fin_p = hcp
        else:
            in_cols = cols
            fin_p = cp
    return padded


def build_adj(edge_index, num_nodes_padded):
    """int8 mask: adj[i, j] = 1 iff edge j->i, plus self-loops on every row
    (real rows: PyG add_self_loops; padded rows: keeps their softmax sane)."""
    src, dst = edge_index[0], edge_index[1]
    adj = jnp.zeros((num_nodes_padded, num_nodes_padded), jnp.int8)
    adj = adj.at[dst, src].set(1)
    diag = jnp.arange(num_nodes_padded)
    adj = adj.at[diag, diag].set(1)
    return adj


def gat_forward(params, x, edge_index):
    # dropout p=0.0 and batchnorm=False in the reference defaults -> identity.
    n, in_feats = x.shape
    padded = pad_gat_params(params, in_feats)

    np_pad = _round_up(max(n, 8), 128)       # lane-dense adj / logits tiles
    adj = build_adj(edge_index, np_pad)      # built once, shared by all layers

    vmem_limit, force_multi, use_bf16_exp = _hw_config()

    x_pad = jnp.zeros((np_pad, padded[0]["fin_p"]), jnp.float32)
    x_pad = x_pad.at[:n, :in_feats].set(x)
    x_cur = x_pad.astype(jnp.bfloat16)

    num_layers = len(padded)
    out = None
    for li, layer in enumerate(padded):
        last = li == num_layers - 1
        out = _gat_conv_layer(x_cur, layer, adj, np_pad, last=last,
                              vmem_limit=vmem_limit, force_multi=force_multi,
                              use_bf16_exp=use_bf16_exp)
        x_cur = out          # hidden layers already bf16: no extra cast pass
    return out[:n, :padded[-1]["out_ch"]]


if __name__ == "__main__":
    key = jax.random.PRNGKey(0)
    N = 64
    in_feats, out_feats, hidden = 16, 8, 32
    layer_heads = [2, 2, 1]

    k_x, k_p = jax.random.split(key)
    x = jax.random.normal(k_x, (N, in_feats), jnp.float32)

    # Deterministic duplicate-free edge set: each node i sends edges to
    # (i+1..i+4) mod N.  edge_index[0] = source, edge_index[1] = target.
    deg = 4
    base = jnp.arange(N)
    src = jnp.tile(base, deg)
    dst = jnp.concatenate([(base + s) % N for s in range(1, deg + 1)])
    edge_index = jnp.stack([src, dst]).astype(jnp.int32)

    params = init_gat_params(k_p, in_feats, out_feats, hidden, layer_heads)

    out = gat_forward(params, x, edge_index)
    out = jax.block_until_ready(out)
    assert out.shape == (N, out_feats), out.shape
    assert bool(jnp.all(jnp.isfinite(out)))
    print("KERNEL_OK")
</pallas_src>

<mosaic_0001>
module attributes {stable_mosaic.version = 11 : i64} {
  func.func @_gat_attn_kernel(%arg0: i32, %arg1: memref<2x128xf32, #tpu.memory_space<vmem>>, %arg2: memref<128x2xf32, #tpu.memory_space<vmem>>, %arg3: memref<128x128xi8, #tpu.memory_space<vmem>>, %arg4: memref<256x128xbf16, #tpu.memory_space<vmem>>, %arg5: memref<1x128xf32, #tpu.memory_space<vmem>>, %arg6: memref<128x128xbf16, #tpu.memory_space<vmem>>) attributes {dimension_semantics = [#tpu.dimension_semantics<parallel>], iteration_bounds = array<i64: 1>, scalar_prefetch = 0 : i64, scratch_operands = 0 : i64, tpu.core_type = #tpu.core_type<tc>, window_params = [{pipeline_mode = #tpu.pipeline_mode<synchronous>, transform_indices = @transform_0, window_bounds = array<i64: 2, 128>}, {transform_indices = @transform_1, window_bounds = array<i64: 128, 2>}, {transform_indices = @transform_2, window_bounds = array<i64: 128, 128>}, {pipeline_mode = #tpu.pipeline_mode<synchronous>, transform_indices = @transform_3, window_bounds = array<i64: 256, 128>}, {pipeline_mode = #tpu.pipeline_mode<synchronous>, transform_indices = @transform_4, window_bounds = array<i64: 1, 128>}, {transform_indices = @transform_5, window_bounds = array<i64: 128, 128>}]} {
    %c0 = arith.constant 0 : index
    %c0_0 = arith.constant 0 : index
    %0 = vector.load %arg3[%c0, %c0_0] : memref<128x128xi8, #tpu.memory_space<vmem>>, vector<128x128xi8>
    %c0_i8 = arith.constant 0 : i8
    %1 = vector.broadcast %c0_i8 : i8 to vector<128x128xi8>
    %2 = arith.cmpi ne, %0, %1 : vector<128x128xi8>
    %c0_1 = arith.constant 0 : index
    %c0_2 = arith.constant 0 : index
    %3 = vector.load %arg1[%c0_1, %c0_2] : memref<2x128xf32, #tpu.memory_space<vmem>>, vector<2x128xf32>
    %c0_3 = arith.constant 0 : index
    %c0_4 = arith.constant 0 : index
    %4 = vector.load %arg2[%c0_3, %c0_4] : memref<128x2xf32, #tpu.memory_space<vmem>>, vector<128x2xf32>
    %5 = vector.extract_strided_slice %4 {offsets = [0, 0], sizes = [128, 1], strides = [1, 1]} : vector<128x2xf32> to vector<128x1xf32>
    %6 = vector.extract_strided_slice %3 {offsets = [0, 0], sizes = [1, 128], strides = [1, 1]} : vector<2x128xf32> to vector<1x128xf32>
    %7 = vector.broadcast %5 : vector<128x1xf32> to vector<128x128xf32>
    %8 = vector.broadcast %6 : vector<1x128xf32> to vector<128x128xf32>
    %9 = arith.addf %7, %8 : vector<128x128xf32>
    %cst = arith.constant 0.000000e+00 : f32
    %10 = vector.broadcast %cst : f32 to vector<128x128xf32>
    %11 = arith.cmpf oge, %9, %10 : vector<128x128xf32>
    %cst_5 = arith.constant 2.000000e-01 : f32
    %12 = vector.broadcast %cst_5 : f32 to vector<128x128xf32>
    %13 = arith.mulf %12, %9 : vector<128x128xf32>
    %14 = arith.select %11, %9, %13 : vector<128x128xi1>, vector<128x128xf32>
    %cst_6 = arith.constant -1.000000e+30 : f32
    %15 = vector.broadcast %cst_6 : f32 to vector<128x128xf32>
    %16 = arith.select %2, %14, %15 : vector<128x128xi1>, vector<128x128xf32>
    %cst_7 = arith.constant dense<0xFF800000> : vector<128xf32>
    %17 = vector.multi_reduction <maximumf>, %16, %cst_7 [1] : vector<128x128xf32> to vector<128xf32>
    %18 = vector.shape_cast %17 : vector<128xf32> to vector<128x1xf32>
    %19 = vector.broadcast %18 : vector<128x1xf32> to vector<128x128xf32>
    %20 = arith.subf %16, %19 : vector<128x128xf32>
    %21 = math.exp %20 : vector<128x128xf32>
    %22 = arith.truncf %21 : vector<128x128xf32> to vector<128x128xbf16>
    %c0_8 = arith.constant 0 : index
    %c0_9 = arith.constant 0 : index
    %23 = vector.load %arg4[%c0_8, %c0_9] : memref<256x128xbf16, #tpu.memory_space<vmem>>, vector<128x128xbf16>
    %cst_10 = arith.constant dense<0.000000e+00> : vector<128x128xf32>
    %24 = tpu.matmul %22, %23, %cst_10 {dimension_numbers = #tpu.dot_dimension_numbers<[1], [0], [0], [1], [0, 0, 1, 1], [], []>} : vector<128x128xbf16>, vector<128x128xbf16>, vector<128x128xf32> -> vector<128x128xf32>
    %25 = vector.extract_strided_slice %4 {offsets = [0, 1], sizes = [128, 1], strides = [1, 1]} : vector<128x2xf32> to vector<128x1xf32>
    %26 = vector.extract_strided_slice %3 {offsets = [1, 0], sizes = [1, 128], strides = [1, 1]} : vector<2x128xf32> to vector<1x128xf32>
    %27 = vector.broadcast %25 : vector<128x1xf32> to vector<128x128xf32>
    %28 = vector.broadcast %26 : vector<1x128xf32> to vector<128x128xf32>
    %29 = arith.addf %27, %28 : vector<128x128xf32>
    %cst_11 = arith.constant 0.000000e+00 : f32
    %30 = vector.broadcast %cst_11 : f32 to vector<128x128xf32>
    %31 = arith.cmpf oge, %29, %30 : vector<128x128xf32>
    %cst_12 = arith.constant 2.000000e-01 : f32
    %32 = vector.broadcast %cst_12 : f32 to vector<128x128xf32>
    %33 = arith.mulf %32, %29 : vector<128x128xf32>
    %34 = arith.select %31, %29, %33 : vector<128x128xi1>, vector<128x128xf32>
    %cst_13 = arith.constant -1.000000e+30 : f32
    %35 = vector.broadcast %cst_13 : f32 to vector<128x128xf32>
    %36 = arith.select %2, %34, %35 : vector<128x128xi1>, vector<128x128xf32>
    %cst_14 = arith.constant dense<0xFF800000> : vector<128xf32>
    %37 = vector.multi_reduction <maximumf>, %36, %cst_14 [1] : vector<128x128xf32> to vector<128xf32>
    %38 = vector.shape_cast %37 : vector<128xf32> to vector<128x1xf32>
    %39 = vector.broadcast %38 : vector<128x1xf32> to vector<128x128xf32>
    %40 = arith.subf %36, %39 : vector<128x128xf32>
    %41 = math.exp %40 : vector<128x128xf32>
    %42 = arith.truncf %41 : vector<128x128xf32> to vector<128x128xbf16>
    %c128 = arith.constant 128 : index
    %c0_15 = arith.constant 0 : index
    %43 = vector.load %arg4[%c128, %c0_15] : memref<256x128xbf16, #tpu.memory_space<vmem>>, vector<128x128xbf16>
    %cst_16 = arith.constant dense<0.000000e+00> : vector<128x128xf32>
    %44 = tpu.matmul %42, %43, %cst_16 {dimension_numbers = #tpu.dot_dimension_numbers<[1], [0], [0], [1], [0, 0, 1, 1], [], []>} : vector<128x128xbf16>, vector<128x128xbf16>, vector<128x128xf32> -> vector<128x128xf32>
    %45 = arith.addf %24, %44 : vector<128x128xf32>
    %46 = vector.extract_strided_slice %45 {offsets = [0, 32], sizes = [128, 1], strides = [1, 1]} : vector<128x128xf32> to vector<128x1xf32>
    %cst_17 = arith.constant 9.99999968E-21 : f32
    %47 = vector.broadcast %cst_17 : f32 to vector<128x1xf32>
    %48 = arith.maximumf %46, %47 : vector<128x1xf32>
    %49 = tpu.reciprocal %48 {approx = true} : vector<128x1xf32> -> vector<128x1xf32>
    %50 = vector.extract_strided_slice %45 {offsets = [0, 96], sizes = [128, 1], strides = [1, 1]} : vector<128x128xf32> to vector<128x1xf32>
    %cst_18 = arith.constant 9.99999968E-21 : f32
    %51 = vector.broadcast %cst_18 : f32 to vector<128x1xf32>
    %52 = arith.maximumf %50, %51 : vector<128x1xf32>
    %53 = tpu.reciprocal %52 {approx = true} : vector<128x1xf32> -> vector<128x1xf32>
    %54 = tpu.iota {dimensions = array<i32: 1>} : vector<1x128xi32>
    %c64_i32 = arith.constant 64 : i32
    %55 = vector.broadcast %c64_i32 : i32 to vector<1x128xi32>
    %56 = arith.cmpi sge, %54, %55 : vector<1x128xi32>
    %57 = vector.shape_cast %56 : vector<1x128xi1> to vector<1x128xi1>
    %58 = vector.broadcast %57 : vector<1x128xi1> to vector<128x128xi1>
    %59 = vector.shape_cast %53 : vector<128x1xf32> to vector<128x1xf32>
    %60 = vector.broadcast %59 : vector<128x1xf32> to vector<128x128xf32>
    %61 = vector.shape_cast %49 : vector<128x1xf32> to vector<128x1xf32>
    %62 = vector.broadcast %61 : vector<128x1xf32> to vector<128x128xf32>
    %63 = arith.select %58, %60, %62 : vector<128x128xi1>, vector<128x128xf32>
    %64 = arith.mulf %45, %63 : vector<128x128xf32>
    %c32_i32 = arith.constant 32 : i32
    %65 = vector.broadcast %c32_i32 : i32 to vector<1x128xi32>
    %66 = arith.cmpi eq, %54, %65 : vector<1x128xi32>
    %c96_i32 = arith.constant 96 : i32
    %67 = vector.broadcast %c96_i32 : i32 to vector<1x128xi32>
    %68 = arith.cmpi eq, %54, %67 : vector<1x128xi32>
    %69 = arith.ori %66, %68 : vector<1x128xi1>
    %cst_19 = arith.constant 0.000000e+00 : f32
    %70 = vector.shape_cast %69 : vector<1x128xi1> to vector<1x128xi1>
    %71 = vector.broadcast %70 : vector<1x128xi1> to vector<128x128xi1>
    %72 = vector.broadcast %cst_19 : f32 to vector<128x128xf32>
    %73 = arith.select %71, %72, %64 : vector<128x128xi1>, vector<128x128xf32>
    %c0_20 = arith.constant 0 : index
    %c0_21 = arith.constant 0 : index
    %74 = vector.load %arg5[%c0_20, %c0_21] : memref<1x128xf32, #tpu.memory_space<vmem>>, vector<1x128xf32>
    %75 = vector.broadcast %74 : vector<1x128xf32> to vector<128x128xf32>
    %76 = arith.addf %73, %75 : vector<128x128xf32>
    %cst_22 = arith.constant 0.000000e+00 : f32
    %77 = vector.broadcast %cst_22 : f32 to vector<128x128xf32>
    %78 = arith.maximumf %76, %77 : vector<128x128xf32>
    %79 = arith.truncf %78 : vector<128x128xf32> to vector<128x128xbf16>
    %c0_23 = arith.constant 0 : index
    %c0_24 = arith.constant 0 : index
    %80 = vector.load %arg6[%c0_23, %c0_24] : memref<128x128xbf16, #tpu.memory_space<vmem>>, vector<128x128xbf16>
    tpu.vector_store %arg6[%c0_23, %c0_24], %79 {strides = array<i32>} : memref<128x128xbf16, #tpu.memory_space<vmem>>, vector<128x128xbf16>,
    return
  }
  func.func @transform_0(%arg0: i32) -> (i32, i32) {
    %c0_i32 = arith.constant 0 : i32
    %c0_i32_0 = arith.constant 0 : i32
    %c0_i32_1 = arith.constant 0 : i32
    return %c0_i32, %c0_i32_0 : i32, i32
  }
  func.func @transform_1(%arg0: i32) -> (i32, i32) {
    %c0_i32 = arith.constant 0 : i32
    %c0_i32_0 = arith.constant 0 : i32
    return %arg0, %c0_i32 : i32, i32
  }
  func.func @transform_2(%arg0: i32) -> (i32, i32) {
    %c0_i32 = arith.constant 0 : i32
    %c0_i32_0 = arith.constant 0 : i32
    return %arg0, %c0_i32 : i32, i32
  }
  func.func @transform_3(%arg0: i32) -> (i32, i32) {
    %c0_i32 = arith.constant 0 : i32
    %c0_i32_0 = arith.constant 0 : i32
    %c0_i32_1 = arith.constant 0 : i32
    return %c0_i32, %c0_i32_0 : i32, i32
  }
  func.func @transform_4(%arg0: i32) -> (i32, i32) {
    %c0_i32 = arith.constant 0 : i32
    %c0_i32_0 = arith.constant 0 : i32
    %c0_i32_1 = arith.constant 0 : i32
    return %c0_i32, %c0_i32_0 : i32, i32
  }
  func.func @transform_5(%arg0: i32) -> (i32, i32) {
    %c0_i32 = arith.constant 0 : i32
    %c0_i32_0 = arith.constant 0 : i32
    return %arg0, %c0_i32 : i32, i32
  }
}

</mosaic_0001>

<llo_original>
// kernel: tpu_custom_call.1
$region0: #{tpu_custom_call.1}
  #allocation0 [shape = 'u32[]', space=smem, size = 0x4, offset = 0x4, fixed_abs, tag = 'smem constant byte address 0x4 - core index']
  #allocation1 [shape = 'u32[144,128]{1,0:T(1,128)}', space=vmem, size = 0x12000, scoped, tag = 'internal scratch']
  %s0 = inlined_call_operand.vmem [shape: f32[2,128], index: 0, kind: input, shape index: {}]
  %s1 = inlined_call_operand.vmem [shape: f32[128,2], index: 1, kind: input, shape index: {}]
  %s2 = inlined_call_operand.hbm [shape: s8[128,128], index: 2, kind: input, shape index: {}]
  %s3 = inlined_call_operand.vmem [shape: bf16[256,128], index: 3, kind: input, shape index: {}]
  %s4 = inlined_call_operand.vmem [shape: f32[1,128], index: 4, kind: input, shape index: {}]
  %s5 = inlined_call_operand.hbm [shape: bf16[128,128], index: 5, kind: output, shape index: {}]
  %s6 = sld [smem:[#allocation0]]
  $region34: #{tpu_custom_call.1} parent=0
    _
  %s8 = ssub.s32 1, %s6
  %s9 = scalar_select 0, %s8, %s6
  $region1: #{tpu_custom_call.1} parent=0
    #allocation2 [shape = 'u8[16384]{0}', space=vmem, size = 0x4000, scoped, tag = 'input window, operand 2, single buffered']
    #allocation3 [shape = 's32[1]{0}', space=sflag, size = 0x4, scoped, tag = 'scoped memory for tpu_custom_call.1']
    #allocation4 [shape = 's32[1]{0}', space=sflag, size = 0x4, scoped, tag = 'scoped memory for tpu_custom_call.1']
    #allocation5 [shape = 'u8[32768]{0}', space=vmem, size = 0x8000, scoped, tag = 'output window, operand 0, single buffered']
    %10 = vsyncpa [#allocation3], 0
    %11 = vsyncpa [#allocation4], 0
    // Predicated region
    $region2: #{tpu_custom_call.1} parent=1 // pred_check
      _
    $region3: #{tpu_custom_call.1} parent=1 // pred_check_branch
      %13 = sbr.rel (0) target = $region5
    $region4: #{tpu_custom_call.1} parent=1 // pred_region
      _
    $region5: #{tpu_custom_call.1} parent=1 // pred_fallthru
      _
    // Predicated region
    $region6: #{tpu_custom_call.1} parent=1 // pred_check
      _
    $region7: #{tpu_custom_call.1} parent=1 // pred_check_branch
      %15 = sbr.rel (0) target = $region9
    $region8: #{tpu_custom_call.1} parent=1 // pred_region
      _
    $region9: #{tpu_custom_call.1} parent=1 // pred_fallthru
      _
    // Predicated region
    $region10: #{tpu_custom_call.1} parent=1 // pred_check
      _
    $region11: #{tpu_custom_call.1} parent=1 // pred_check_branch
      %17 = sbr.rel (0) target = $region13
    $region12: #{tpu_custom_call.1} parent=1 // pred_region
      %s19 = ssub.s32 512, 512
      %20 = vsyncadd [#allocation3], %s19
      %s21 = sshll.u32 [#allocation2], 4
      %s22 = int_to_ptr.vmem [resolvable:$true] %s21
      %27 = dma.hbm_to_vmem [thread:$0]  %s2, 512, %s22, [#allocation3], 128, 128, 8
    $region13: #{tpu_custom_call.1} parent=1 // pred_fallthru
      _
    // Predicated region
    $region14: #{tpu_custom_call.1} parent=1 // pred_check
      _
    $region15: #{tpu_custom_call.1} parent=1 // pred_check_branch
      %29 = sbr.rel (0) target = $region17
    $region16: #{tpu_custom_call.1} parent=1 // pred_region
      _
    $region17: #{tpu_custom_call.1} parent=1 // pred_fallthru
      _
    // Predicated region
    $region18: #{tpu_custom_call.1} parent=1 // pred_check
      _
    $region19: #{tpu_custom_call.1} parent=1 // pred_check_branch
      %31 = sbr.rel (0) target = $region21
    $region20: #{tpu_custom_call.1} parent=1 // pred_region
      _
    $region21: #{tpu_custom_call.1} parent=1 // pred_fallthru
      _
    // Predicated region
    $region22: #{tpu_custom_call.1} parent=1 // pred_check
      _
    $region23: #{tpu_custom_call.1} parent=1 // pred_check_branch
      %33 = sbr.rel (0) target = $region25
    $region24: #{tpu_custom_call.1} parent=1 // pred_region
      %34 = dma.done [#allocation3], 512
    $region25: #{tpu_custom_call.1} parent=1 // pred_fallthru
      _
    %v38 = vld [vmem:[#allocation2] sm:$0xff]
    %v39 = vld [vmem:[#allocation2 + $0x8] sm:$0xff]
    %v40 = vld [vmem:[#allocation2 + $0x10] sm:$0xff]
    %v41 = vld [vmem:[#allocation2 + $0x18] sm:$0xff]
    %vm42 = vnez %v38
    %vm43 = vnez %v39
    %vm44 = vnez %v40
    %vm45 = vnez %v41
    %v46 = vld [vmem:[%s0] sm:$0x3]
    %v47 = vld [vmem:[%s1] sm:$0xff]
    %v48 = vld [vmem:[%s1 + $0x8] sm:$0xff]
    %v49 = vld [vmem:[%s1 + $0x10] sm:$0xff]
    %v50 = vld [vmem:[%s1 + $0x18] sm:$0xff]
    %v51 = vld [vmem:[%s1 + $0x20] sm:$0xff]
    %v52 = vld [vmem:[%s1 + $0x28] sm:$0xff]
    %v53 = vld [vmem:[%s1 + $0x30] sm:$0xff]
    %v54 = vld [vmem:[%s1 + $0x38] sm:$0xff]
    %v55 = vld [vmem:[%s1 + $0x40] sm:$0xff]
    %v56 = vld [vmem:[%s1 + $0x48] sm:$0xff]
    %v57 = vld [vmem:[%s1 + $0x50] sm:$0xff]
    %v58 = vld [vmem:[%s1 + $0x58] sm:$0xff]
    %v59 = vld [vmem:[%s1 + $0x60] sm:$0xff]
    %v60 = vld [vmem:[%s1 + $0x68] sm:$0xff]
    %v61 = vld [vmem:[%s1 + $0x70] sm:$0xff]
    %v62 = vld [vmem:[%s1 + $0x78] sm:$0xff]
    %64 = vset.pattern.permute.xlu0 0
    %65 = vperm.xlu0 %64, %v47
    %v66 = vpop.permute.xlu0 %65
    %69 = vset.pattern.permute.xlu0 0
    %70 = vperm.xlu0 %69, %v48
    %v71 = vpop.permute.xlu0 %70
    %74 = vset.pattern.permute.xlu0 0
    %75 = vperm.xlu0 %74, %v49
    %v76 = vpop.permute.xlu0 %75
    %79 = vset.pattern.permute.xlu0 0
    %80 = vperm.xlu0 %79, %v50
    %v81 = vpop.permute.xlu0 %80
    %84 = vset.pattern.permute.xlu0 0
    %85 = vperm.xlu0 %84, %v51
    %v86 = vpop.permute.xlu0 %85
    %89 = vset.pattern.permute.xlu0 0
    %90 = vperm.xlu0 %89, %v52
    %v91 = vpop.permute.xlu0 %90
    %94 = vset.pattern.permute.xlu0 0
    %95 = vperm.xlu0 %94, %v53
    %v96 = vpop.permute.xlu0 %95
    %99 = vset.pattern.permute.xlu0 0
    %100 = vperm.xlu0 %99, %v54
    %v101 = vpop.permute.xlu0 %100
    %104 = vset.pattern.permute.xlu0 0
    %105 = vperm.xlu0 %104, %v55
    %v106 = vpop.permute.xlu0 %105
    %109 = vset.pattern.permute.xlu0 0
    %110 = vperm.xlu0 %109, %v56
    %v111 = vpop.permute.xlu0 %110
    %114 = vset.pattern.permute.xlu0 0
    %115 = vperm.xlu0 %114, %v57
    %v116 = vpop.permute.xlu0 %115
    %119 = vset.pattern.permute.xlu0 0
    %120 = vperm.xlu0 %119, %v58
    %v121 = vpop.permute.xlu0 %120
    %124 = vset.pattern.permute.xlu0 0
    %125 = vperm.xlu0 %124, %v59
    %v126 = vpop.permute.xlu0 %125
    %129 = vset.pattern.permute.xlu0 0
    %130 = vperm.xlu0 %129, %v60
    %v131 = vpop.permute.xlu0 %130
    %134 = vset.pattern.permute.xlu0 0
    %135 = vperm.xlu0 %134, %v61
    %v136 = vpop.permute.xlu0 %135
    %139 = vset.pattern.permute.xlu0 0
    %140 = vperm.xlu0 %139, %v62
    %v141 = vpop.permute.xlu0 %140
    %v143 = vlaneseq
    %v144 = vshrl.u32 %v143, 7
    %v145 = vsub.s32 0, %v144
    %v146 = vrot.slane %v46, %v145
    %v147 = vadd.f32 %v66, %v146
    %v148 = vadd.f32 %v71, %v146
    %v149 = vadd.f32 %v76, %v146
    %v150 = vadd.f32 %v81, %v146
    %v151 = vadd.f32 %v86, %v146
    %v152 = vadd.f32 %v91, %v146
    %v153 = vadd.f32 %v96, %v146
    %v154 = vadd.f32 %v101, %v146
    %v155 = vadd.f32 %v106, %v146
    %v156 = vadd.f32 %v111, %v146
    %v157 = vadd.f32 %v116, %v146
    %v158 = vadd.f32 %v121, %v146
    %v159 = vadd.f32 %v126, %v146
    %v160 = vadd.f32 %v131, %v146
    %v161 = vadd.f32 %v136, %v146
    %v162 = vadd.f32 %v141, %v146
    %vm163 = vcmp.ge.f32.partialorder %v147, 0.0
    %vm164 = vcmp.ge.f32.partialorder %v148, 0.0
    %vm165 = vcmp.ge.f32.partialorder %v149, 0.0
    %vm166 = vcmp.ge.f32.partialorder %v150, 0.0
    %vm167 = vcmp.ge.f32.partialorder %v151, 0.0
    %vm168 = vcmp.ge.f32.partialorder %v152, 0.0
    %vm169 = vcmp.ge.f32.partialorder %v153, 0.0
    %vm170 = vcmp.ge.f32.partialorder %v154, 0.0
    %vm171 = vcmp.ge.f32.partialorder %v155, 0.0
    %vm172 = vcmp.ge.f32.partialorder %v156, 0.0
    %vm173 = vcmp.ge.f32.partialorder %v157, 0.0
    %vm174 = vcmp.ge.f32.partialorder %v158, 0.0
    %vm175 = vcmp.ge.f32.partialorder %v159, 0.0
    %vm176 = vcmp.ge.f32.partialorder %v160, 0.0
    %vm177 = vcmp.ge.f32.partialorder %v161, 0.0
    %vm178 = vcmp.ge.f32.partialorder %v162, 0.0
    %v179 = vmul.f32 %v147, 0.2
    %v180 = vmul.f32 %v148, 0.2
    %v181 = vmul.f32 %v149, 0.2
    %v182 = vmul.f32 %v150, 0.2
    %v183 = vmul.f32 %v151, 0.2
    %v184 = vmul.f32 %v152, 0.2
    %v185 = vmul.f32 %v153, 0.2
    %v186 = vmul.f32 %v154, 0.2
    %v187 = vmul.f32 %v155, 0.2
    %v188 = vmul.f32 %v156, 0.2
    %v189 = vmul.f32 %v157, 0.2
    %v190 = vmul.f32 %v158, 0.2
    %v191 = vmul.f32 %v159, 0.2
    %v192 = vmul.f32 %v160, 0.2
    %v193 = vmul.f32 %v161, 0.2
    %v194 = vmul.f32 %v162, 0.2
    %v195 = vsel %vm163, %v147, %v179
    %v196 = vsel %vm164, %v148, %v180
    %v197 = vsel %vm165, %v149, %v181
    %v198 = vsel %vm166, %v150, %v182
    %v199 = vsel %vm167, %v151, %v183
    %v200 = vsel %vm168, %v152, %v184
    %v201 = vsel %vm169, %v153, %v185
    %v202 = vsel %vm170, %v154, %v186
    %v203 = vsel %vm171, %v155, %v187
    %v204 = vsel %vm172, %v156, %v188
    %v205 = vsel %vm173, %v157, %v189
    %v206 = vsel %vm174, %v158, %v190
    %v207 = vsel %vm175, %v159, %v191
    %v208 = vsel %vm176, %v160, %v192
    %v209 = vsel %vm177, %v161, %v193
    %v210 = vsel %vm178, %v162, %v194
    %v211 = vsel %vm42, 16843009, 0
    %v212 = vsel %vm43, 16843009, 0
    %v213 = vsel %vm44, 16843009, 0
    %v214 = vsel %vm45, 16843009, 0
    %v215 = vunpack.c.0.s8 %v211
    %v216 = vunpack.c.1.s8 %v211
    %v217 = vunpack.c.2.s8 %v211
    %v218 = vunpack.c.3.s8 %v211
    %v219 = vunpack.c.0.s8 %v212
    %v220 = vunpack.c.1.s8 %v212
    %v221 = vunpack.c.2.s8 %v212
    %v222 = vunpack.c.3.s8 %v212
    %v223 = vunpack.c.0.s8 %v213
    %v224 = vunpack.c.1.s8 %v213
    %v225 = vunpack.c.2.s8 %v213
    %v226 = vunpack.c.3.s8 %v213
    %v227 = vunpack.c.0.s8 %v214
    %v228 = vunpack.c.1.s8 %v214
    %v229 = vunpack.c.2.s8 %v214
    %v230 = vunpack.c.3.s8 %v214
    %v231 = vpack.c.b16 %v215, %v215
    %v232 = vpack.c.b8 %v231, %v231
    %v233 = vpack.c.b16 %v216, %v216
    %v234 = vpack.c.b8 %v233, %v233
    %v235 = vpack.c.b16 %v217, %v217
    %v236 = vpack.c.b8 %v235, %v235
    %v237 = vpack.c.b16 %v218, %v218
    %v238 = vpack.c.b8 %v237, %v237
    %v239 = vpack.c.b16 %v219, %v219
    %v240 = vpack.c.b8 %v239, %v239
    %v241 = vpack.c.b16 %v220, %v220
    %v242 = vpack.c.b8 %v241, %v241
    %v243 = vpack.c.b16 %v221, %v221
    %v244 = vpack.c.b8 %v243, %v243
    %v245 = vpack.c.b16 %v222, %v222
    %v246 = vpack.c.b8 %v245, %v245
    %v247 = vpack.c.b16 %v223, %v223
    %v248 = vpack.c.b8 %v247, %v247
    %v249 = vpack.c.b16 %v224, %v224
    %v250 = vpack.c.b8 %v249, %v249
    %v251 = vpack.c.b16 %v225, %v225
    %v252 = vpack.c.b8 %v251, %v251
    %v253 = vpack.c.b16 %v226, %v226
    %v254 = vpack.c.b8 %v253, %v253
    %v255 = vpack.c.b16 %v227, %v227
    %v256 = vpack.c.b8 %v255, %v255
    %v257 = vpack.c.b16 %v228, %v228
    %v258 = vpack.c.b8 %v257, %v257
    %v259 = vpack.c.b16 %v229, %v229
    %v260 = vpack.c.b8 %v259, %v259
    %v261 = vpack.c.b16 %v230, %v230
    %v262 = vpack.c.b8 %v261, %v261
    %vm263 = vnez %v232
    %vm264 = vnez %v234
    %vm265 = vnez %v236
    %vm266 = vnez %v238
    %vm267 = vnez %v240
    %vm268 = vnez %v242
    %vm269 = vnez %v244
    %vm270 = vnez %v246
    %vm271 = vnez %v248
    %vm272 = vnez %v250
    %vm273 = vnez %v252
    %vm274 = vnez %v254
    %vm275 = vnez %v256
    %vm276 = vnez %v258
    %vm277 = vnez %v260
    %vm278 = vnez %v262
    %v279 = vsel %vm263, 16843009, 0
    %v280 = vsel %vm264, 16843009, 0
    %v281 = vsel %vm265, 16843009, 0
    %v282 = vsel %vm266, 16843009, 0
    %v283 = vsel %vm267, 16843009, 0
    %v284 = vsel %vm268, 16843009, 0
    %v285 = vsel %vm269, 16843009, 0
    %v286 = vsel %vm270, 16843009, 0
    %v287 = vsel %vm271, 16843009, 0
    %v288 = vsel %vm272, 16843009, 0
    %v289 = vsel %vm273, 16843009, 0
    %v290 = vsel %vm274, 16843009, 0
    %v291 = vsel %vm275, 16843009, 0
    %v292 = vsel %vm276, 16843009, 0
    %v293 = vsel %vm277, 16843009, 0
    %v294 = vsel %vm278, 16843009, 0
    %v295 = vunpack.c.0.s8 %v279
    %v296 = vunpack.c.0.s8 %v280
    %v297 = vunpack.c.0.s8 %v281
    %v298 = vunpack.c.0.s8 %v282
    %v299 = vunpack.c.0.s8 %v283
    %v300 = vunpack.c.0.s8 %v284
    %v301 = vunpack.c.0.s8 %v285
    %v302 = vunpack.c.0.s8 %v286
    %v303 = vunpack.c.0.s8 %v287
    %v304 = vunpack.c.0.s8 %v288
    %v305 = vunpack.c.0.s8 %v289
    %v306 = vunpack.c.0.s8 %v290
    %v307 = vunpack.c.0.s8 %v291
    %v308 = vunpack.c.0.s8 %v292
    %v309 = vunpack.c.0.s8 %v293
    %v310 = vunpack.c.0.s8 %v294
    %vm311 = vcmp.ne.s32.totalorder %v295, 0
    %vm312 = vcmp.ne.s32.totalorder %v296, 0
    %vm313 = vcmp.ne.s32.totalorder %v297, 0
    %vm314 = vcmp.ne.s32.totalorder %v298, 0
    %vm315 = vcmp.ne.s32.totalorder %v299, 0
    %vm316 = vcmp.ne.s32.totalorder %v300, 0
    %vm317 = vcmp.ne.s32.totalorder %v301, 0
    %vm318 = vcmp.ne.s32.totalorder %v302, 0
    %vm319 = vcmp.ne.s32.totalorder %v303, 0
    %vm320 = vcmp.ne.s32.totalorder %v304, 0
    %vm321 = vcmp.ne.s32.totalorder %v305, 0
    %vm322 = vcmp.ne.s32.totalorder %v306, 0
    %vm323 = vcmp.ne.s32.totalorder %v307, 0
    %vm324 = vcmp.ne.s32.totalorder %v308, 0
    %vm325 = vcmp.ne.s32.totalorder %v309, 0
    %vm326 = vcmp.ne.s32.totalorder %v310, 0
    %v327 = vsel %vm311, %v195, -1e+30
    %v328 = vsel %vm312, %v196, -1e+30
    %v329 = vsel %vm313, %v197, -1e+30
    %v330 = vsel %vm314, %v198, -1e+30
    %v331 = vsel %vm315, %v199, -1e+30
    %v332 = vsel %vm316, %v200, -1e+30
    %v333 = vsel %vm317, %v201, -1e+30
    %v334 = vsel %vm318, %v202, -1e+30
    %v335 = vsel %vm319, %v203, -1e+30
    %v336 = vsel %vm320, %v204, -1e+30
    %v337 = vsel %vm321, %v205, -1e+30
    %v338 = vsel %vm322, %v206, -1e+30
    %v339 = vsel %vm323, %v207, -1e+30
    %v340 = vsel %vm324, %v208, -1e+30
    %v341 = vsel %vm325, %v209, -1e+30
    %v342 = vsel %vm326, %v210, -1e+30
    %343 = vmax.xlane.f32.xlu0 %v327
    %v344 = vpop.xlane.xlu0 %343
    %345 = vmax.xlane.f32.xlu0 %v328
    %v346 = vpop.xlane.xlu0 %345
    %347 = vmax.xlane.f32.xlu0 %v329
    %v348 = vpop.xlane.xlu0 %347
    %349 = vmax.xlane.f32.xlu0 %v330
    %v350 = vpop.xlane.xlu0 %349
    %351 = vmax.xlane.f32.xlu0 %v331
    %v352 = vpop.xlane.xlu0 %351
    %353 = vmax.xlane.f32.xlu0 %v332
    %v354 = vpop.xlane.xlu0 %353
    %355 = vmax.xlane.f32.xlu0 %v333
    %v356 = vpop.xlane.xlu0 %355
    %357 = vmax.xlane.f32.xlu0 %v334
    %v358 = vpop.xlane.xlu0 %357
    %359 = vmax.xlane.f32.xlu0 %v335
    %v360 = vpop.xlane.xlu0 %359
    %361 = vmax.xlane.f32.xlu0 %v336
    %v362 = vpop.xlane.xlu0 %361
    %363 = vmax.xlane.f32.xlu0 %v337
    %v364 = vpop.xlane.xlu0 %363
    %365 = vmax.xlane.f32.xlu0 %v338
    %v366 = vpop.xlane.xlu0 %365
    %367 = vmax.xlane.f32.xlu0 %v339
    %v368 = vpop.xlane.xlu0 %367
    %369 = vmax.xlane.f32.xlu0 %v340
    %v370 = vpop.xlane.xlu0 %369
    %371 = vmax.xlane.f32.xlu0 %v341
    %v372 = vpop.xlane.xlu0 %371
    %373 = vmax.xlane.f32.xlu0 %v342
    %v374 = vpop.xlane.xlu0 %373
    %v375 = vsub.f32 %v327, %v344
    %v376 = vsub.f32 %v328, %v346
    %v377 = vsub.f32 %v329, %v348
    %v378 = vsub.f32 %v330, %v350
    %v379 = vsub.f32 %v331, %v352
    %v380 = vsub.f32 %v332, %v354
    %v381 = vsub.f32 %v333, %v356
    %v382 = vsub.f32 %v334, %v358
    %v383 = vsub.f32 %v335, %v360
    %v384 = vsub.f32 %v336, %v362
    %v385 = vsub.f32 %v337, %v364
    %v386 = vsub.f32 %v338, %v366
    %v387 = vsub.f32 %v339, %v368
    %v388 = vsub.f32 %v340, %v370
    %v389 = vsub.f32 %v341, %v372
    %v390 = vsub.f32 %v342, %v374
    %v391 = vmul.f32 %v375, 1.442695
    %v392 = vpow.pop %v391
    %v393 = vmul.f32 %v376, 1.442695
    %v394 = vpow.pop %v393
    %v395 = vmul.f32 %v377, 1.442695
    %v396 = vpow.pop %v395
    %v397 = vmul.f32 %v378, 1.442695
    %v398 = vpow.pop %v397
    %v399 = vmul.f32 %v379, 1.442695
    %v400 = vpow.pop %v399
    %v401 = vmul.f32 %v380, 1.442695
    %v402 = vpow.pop %v401
    %v403 = vmul.f32 %v381, 1.442695
    %v404 = vpow.pop %v403
    %v405 = vmul.f32 %v382, 1.442695
    %v406 = vpow.pop %v405
    %v407 = vmul.f32 %v383, 1.442695
    %v408 = vpow.pop %v407
    %v409 = vmul.f32 %v384, 1.442695
    %v410 = vpow.pop %v409
    %v411 = vmul.f32 %v385, 1.442695
    %v412 = vpow.pop %v411
    %v413 = vmul.f32 %v386, 1.442695
    %v414 = vpow.pop %v413
    %v415 = vmul.f32 %v387, 1.442695
    %v416 = vpow.pop %v415
    %v417 = vmul.f32 %v388, 1.442695
    %v418 = vpow.pop %v417
    %v419 = vmul.f32 %v389, 1.442695
    %v420 = vpow.pop %v419
    %v421 = vmul.f32 %v390, 1.442695
    %v422 = vpow.pop %v421
    %v423 = vpack.c.bf16 %v394, %v392
    %v424 = vpack.c.bf16 %v398, %v396
    %v425 = vpack.c.bf16 %v402, %v400
    %v426 = vpack.c.bf16 %v406, %v404
    %v427 = vpack.c.bf16 %v410, %v408
    %v428 = vpack.c.bf16 %v414, %v412
    %v429 = vpack.c.bf16 %v418, %v416
    %v430 = vpack.c.bf16 %v422, %v420
    %v431 = vld [vmem:[%s3] sm:$0xf]
    %v432 = vld [vmem:[%s3 + $0x4] sm:$0xf]
    %v433 = vld [vmem:[%s3 + $0x8] sm:$0xf]
    %v434 = vld [vmem:[%s3 + $0xc] sm:$0xf]
    %v435 = vld [vmem:[%s3 + $0x10] sm:$0xf]
    %v436 = vld [vmem:[%s3 + $0x14] sm:$0xf]
    %v437 = vld [vmem:[%s3 + $0x18] sm:$0xf]
    %v438 = vld [vmem:[%s3 + $0x1c] sm:$0xf]
    %v439 = vld [vmem:[%s3 + $0x20] sm:$0xf]
    %v440 = vld [vmem:[%s3 + $0x24] sm:$0xf]
    %v441 = vld [vmem:[%s3 + $0x28] sm:$0xf]
    %v442 = vld [vmem:[%s3 + $0x2c] sm:$0xf]
    %v443 = vld [vmem:[%s3 + $0x30] sm:$0xf]
    %v444 = vld [vmem:[%s3 + $0x34] sm:$0xf]
    %v445 = vld [vmem:[%s3 + $0x38] sm:$0xf]
    %v446 = vld [vmem:[%s3 + $0x3c] sm:$0xf]
    %447 = vset.pattern.permute.xlu0 1
    %448 = vperm.xlu0 %447, %v47
    %v449 = vpop.permute.xlu0 %448
    %451 = vset.pattern.permute.xlu0 1
    %452 = vperm.xlu0 %451, %v48
    %v453 = vpop.permute.xlu0 %452
    %455 = vset.pattern.permute.xlu0 1
    %456 = vperm.xlu0 %455, %v49
    %v457 = vpop.permute.xlu0 %456
    %459 = vset.pattern.permute.xlu0 1
    %460 = vperm.xlu0 %459, %v50
    %v461 = vpop.permute.xlu0 %460
    %463 = vset.pattern.permute.xlu0 1
    %464 = vperm.xlu0 %463, %v51
    %v465 = vpop.permute.xlu0 %464
    %467 = vset.pattern.permute.xlu0 1
    %468 = vperm.xlu0 %467, %v52
    %v469 = vpop.permute.xlu0 %468
    %471 = vset.pattern.permute.xlu0 1
    %472 = vperm.xlu0 %471, %v53
    %v473 = vpop.permute.xlu0 %472
    %475 = vset.pattern.permute.xlu0 1
    %476 = vperm.xlu0 %475, %v54
    %v477 = vpop.permute.xlu0 %476
    %479 = vset.pattern.permute.xlu0 1
    %480 = vperm.xlu0 %479, %v55
    %v481 = vpop.permute.xlu0 %480
    %483 = vset.pattern.permute.xlu0 1
    %484 = vperm.xlu0 %483, %v56
    %v485 = vpop.permute.xlu0 %484
    %487 = vset.pattern.permute.xlu0 1
    %488 = vperm.xlu0 %487, %v57
    %v489 = vpop.permute.xlu0 %488
    %491 = vset.pattern.permute.xlu0 1
    %492 = vperm.xlu0 %491, %v58
    %v493 = vpop.permute.xlu0 %492
    %495 = vset.pattern.permute.xlu0 1
    %496 = vperm.xlu0 %495, %v59
    %v497 = vpop.permute.xlu0 %496
    %499 = vset.pattern.permute.xlu0 1
    %500 = vperm.xlu0 %499, %v60
    %v501 = vpop.permute.xlu0 %500
    %503 = vset.pattern.permute.xlu0 1
    %504 = vperm.xlu0 %503, %v61
    %v505 = vpop.permute.xlu0 %504
    %507 = vset.pattern.permute.xlu0 1
    %508 = vperm.xlu0 %507, %v62
    %v509 = vpop.permute.xlu0 %508
    %v511 = vlaneseq
    %v512 = vshrl.u32 %v511, 7
    %v513 = vsub.s32 1, %v512
    %v514 = vrot.slane %v46, %v513
    %v515 = vadd.f32 %v449, %v514
    %v516 = vadd.f32 %v453, %v514
    %v517 = vadd.f32 %v457, %v514
    %v518 = vadd.f32 %v461, %v514
    %v519 = vadd.f32 %v465, %v514
    %v520 = vadd.f32 %v469, %v514
    %v521 = vadd.f32 %v473, %v514
    %v522 = vadd.f32 %v477, %v514
    %v523 = vadd.f32 %v481, %v514
    %v524 = vadd.f32 %v485, %v514
    %v525 = vadd.f32 %v489, %v514
    %v526 = vadd.f32 %v493, %v514
    %v527 = vadd.f32 %v497, %v514
    %v528 = vadd.f32 %v501, %v514
    %v529 = vadd.f32 %v505, %v514
    %v530 = vadd.f32 %v509, %v514
    %vm531 = vcmp.ge.f32.partialorder %v515, 0.0
    %vm532 = vcmp.ge.f32.partialorder %v516, 0.0
    %vm533 = vcmp.ge.f32.partialorder %v517, 0.0
    %vm534 = vcmp.ge.f32.partialorder %v518, 0.0
    %vm535 = vcmp.ge.f32.partialorder %v519, 0.0
    %vm536 = vcmp.ge.f32.partialorder %v520, 0.0
    %vm537 = vcmp.ge.f32.partialorder %v521, 0.0
    %vm538 = vcmp.ge.f32.partialorder %v522, 0.0
    %vm539 = vcmp.ge.f32.partialorder %v523, 0.0
    %vm540 = vcmp.ge.f32.partialorder %v524, 0.0
    %vm541 = vcmp.ge.f32.partialorder %v525, 0.0
    %vm542 = vcmp.ge.f32.partialorder %v526, 0.0
    %vm543 = vcmp.ge.f32.partialorder %v527, 0.0
    %vm544 = vcmp.ge.f32.partialorder %v528, 0.0
    %vm545 = vcmp.ge.f32.partialorder %v529, 0.0
    %vm546 = vcmp.ge.f32.partialorder %v530, 0.0
    %v547 = vmul.f32 %v515, 0.2
    %v548 = vmul.f32 %v516, 0.2
    %v549 = vmul.f32 %v517, 0.2
    %v550 = vmul.f32 %v518, 0.2
    %v551 = vmul.f32 %v519, 0.2
    %v552 = vmul.f32 %v520, 0.2
    %v553 = vmul.f32 %v521, 0.2
    %v554 = vmul.f32 %v522, 0.2
    %v555 = vmul.f32 %v523, 0.2
    %v556 = vmul.f32 %v524, 0.2
    %v557 = vmul.f32 %v525, 0.2
    %v558 = vmul.f32 %v526, 0.2
    %v559 = vmul.f32 %v527, 0.2
    %v560 = vmul.f32 %v528, 0.2
    %v561 = vmul.f32 %v529, 0.2
    %v562 = vmul.f32 %v530, 0.2
    %v563 = vsel %vm531, %v515, %v547
    %v564 = vsel %vm532, %v516, %v548
    %v565 = vsel %vm533, %v517, %v549
    %v566 = vsel %vm534, %v518, %v550
    %v567 = vsel %vm535, %v519, %v551
    %v568 = vsel %vm536, %v520, %v552
    %v569 = vsel %vm537, %v521, %v553
    %v570 = vsel %vm538, %v522, %v554
    %v571 = vsel %vm539, %v523, %v555
    %v572 = vsel %vm540, %v524, %v556
    %v573 = vsel %vm541, %v525, %v557
    %v574 = vsel %vm542, %v526, %v558
    %v575 = vsel %vm543, %v527, %v559
    %v576 = vsel %vm544, %v528, %v560
    %v577 = vsel %vm545, %v529, %v561
    %v578 = vsel %vm546, %v530, %v562
    %v579 = vsel %vm311, %v563, -1e+30
    %v580 = vsel %vm312, %v564, -1e+30
    %v581 = vsel %vm313, %v565, -1e+30
    %v582 = vsel %vm314, %v566, -1e+30
    %v583 = vsel %vm315, %v567, -1e+30
    %v584 = vsel %vm316, %v568, -1e+30
    %v585 = vsel %vm317, %v569, -1e+30
    %v586 = vsel %vm318, %v570, -1e+30
    %v587 = vsel %vm319, %v571, -1e+30
    %v588 = vsel %vm320, %v572, -1e+30
    %v589 = vsel %vm321, %v573, -1e+30
    %v590 = vsel %vm322, %v574, -1e+30
    %v591 = vsel %vm323, %v575, -1e+30
    %v592 = vsel %vm324, %v576, -1e+30
    %v593 = vsel %vm325, %v577, -1e+30
    %v594 = vsel %vm326, %v578, -1e+30
    %595 = vmax.xlane.f32.xlu0 %v579
    %v596 = vpop.xlane.xlu0 %595
    %597 = vmax.xlane.f32.xlu0 %v580
    %v598 = vpop.xlane.xlu0 %597
    %599 = vmax.xlane.f32.xlu0 %v581
    %v600 = vpop.xlane.xlu0 %599
    %601 = vmax.xlane.f32.xlu0 %v582
    %v602 = vpop.xlane.xlu0 %601
    %603 = vmax.xlane.f32.xlu0 %v583
    %v604 = vpop.xlane.xlu0 %603
    %605 = vmax.xlane.f32.xlu0 %v584
    %v606 = vpop.xlane.xlu0 %605
    %607 = vmax.xlane.f32.xlu0 %v585
    %v608 = vpop.xlane.xlu0 %607
    %609 = vmax.xlane.f32.xlu0 %v586
    %v610 = vpop.xlane.xlu0 %609
    %611 = vmax.xlane.f32.xlu0 %v587
    %v612 = vpop.xlane.xlu0 %611
    %613 = vmax.xlane.f32.xlu0 %v588
    %v614 = vpop.xlane.xlu0 %613
    %615 = vmax.xlane.f32.xlu0 %v589
    %v616 = vpop.xlane.xlu0 %615
    %617 = vmax.xlane.f32.xlu0 %v590
    %v618 = vpop.xlane.xlu0 %617
    %619 = vmax.xlane.f32.xlu0 %v591
    %v620 = vpop.xlane.xlu0 %619
    %621 = vmax.xlane.f32.xlu0 %v592
    %v622 = vpop.xlane.xlu0 %621
    %623 = vmax.xlane.f32.xlu0 %v593
    %v624 = vpop.xlane.xlu0 %623
    %625 = vmax.xlane.f32.xlu0 %v594
    %v626 = vpop.xlane.xlu0 %625
    %v627 = vsub.f32 %v579, %v596
    %v628 = vsub.f32 %v580, %v598
    %v629 = vsub.f32 %v581, %v600
    %v630 = vsub.f32 %v582, %v602
    %v631 = vsub.f32 %v583, %v604
    %v632 = vsub.f32 %v584, %v606
    %v633 = vsub.f32 %v585, %v608
    %v634 = vsub.f32 %v586, %v610
    %v635 = vsub.f32 %v587, %v612
    %v636 = vsub.f32 %v588, %v614
    %v637 = vsub.f32 %v589, %v616
    %v638 = vsub.f32 %v590, %v618
    %v639 = vsub.f32 %v591, %v620
    %v640 = vsub.f32 %v592, %v622
    %v641 = vsub.f32 %v593, %v624
    %v642 = vsub.f32 %v594, %v626
    %v643 = vmul.f32 %v627, 1.442695
    %v644 = vpow.pop %v643
    %v645 = vmul.f32 %v628, 1.442695
    %v646 = vpow.pop %v645
    %v647 = vmul.f32 %v629, 1.442695
    %v648 = vpow.pop %v647
    %v649 = vmul.f32 %v630, 1.442695
    %v650 = vpow.pop %v649
    %v651 = vmul.f32 %v631, 1.442695
    %v652 = vpow.pop %v651
    %v653 = vmul.f32 %v632, 1.442695
    %v654 = vpow.pop %v653
    %v655 = vmul.f32 %v633, 1.442695
    %v656 = vpow.pop %v655
    %v657 = vmul.f32 %v634, 1.442695
    %v658 = vpow.pop %v657
    %v659 = vmul.f32 %v635, 1.442695
    %v660 = vpow.pop %v659
    %v661 = vmul.f32 %v636, 1.442695
    %v662 = vpow.pop %v661
    %v663 = vmul.f32 %v637, 1.442695
    %v664 = vpow.pop %v663
    %v665 = vmul.f32 %v638, 1.442695
    %v666 = vpow.pop %v665
    %v667 = vmul.f32 %v639, 1.442695
    %v668 = vpow.pop %v667
    %v669 = vmul.f32 %v640, 1.442695
    %v670 = vpow.pop %v669
    %v671 = vmul.f32 %v641, 1.442695
    %v672 = vpow.pop %v671
    %v673 = vmul.f32 %v642, 1.442695
    %v674 = vpow.pop %v673
    %v675 = vpack.c.bf16 %v646, %v644
    %v676 = vpack.c.bf16 %v650, %v648
    %v677 = vpack.c.bf16 %v654, %v652
    %v678 = vpack.c.bf16 %v658, %v656
    %v679 = vpack.c.bf16 %v662, %v660
    %v680 = vpack.c.bf16 %v666, %v664
    %v681 = vpack.c.bf16 %v670, %v668
    %v682 = vpack.c.bf16 %v674, %v672
    %v683 = vld [vmem:[%s3 + $0x40] sm:$0xf]
    %v684 = vld [vmem:[%s3 + $0x44] sm:$0xf]
    %v685 = vld [vmem:[%s3 + $0x48] sm:$0xf]
    %v686 = vld [vmem:[%s3 + $0x4c] sm:$0xf]
    %v687 = vld [vmem:[%s3 + $0x50] sm:$0xf]
    %v688 = vld [vmem:[%s3 + $0x54] sm:$0xf]
    %v689 = vld [vmem:[%s3 + $0x58] sm:$0xf]
    %v690 = vld [vmem:[%s3 + $0x5c] sm:$0xf]
    %v691 = vld [vmem:[%s3 + $0x60] sm:$0xf]
    %v692 = vld [vmem:[%s3 + $0x64] sm:$0xf]
    %v693 = vld [vmem:[%s3 + $0x68] sm:$0xf]
    %v694 = vld [vmem:[%s3 + $0x6c] sm:$0xf]
    %v695 = vld [vmem:[%s3 + $0x70] sm:$0xf]
    %v696 = vld [vmem:[%s3 + $0x74] sm:$0xf]
    %v697 = vld [vmem:[%s3 + $0x78] sm:$0xf]
    %v698 = vld [vmem:[%s3 + $0x7c] sm:$0xf]
    %v715 = vunpack.c.l.b16 %v683
    %v716 = vunpack.c.l.b16 %v684
    %v717 = vunpack.c.l.b16 %v685
    %v718 = vunpack.c.l.b16 %v686
    %v719 = vunpack.c.l.b16 %v687
    %v720 = vunpack.c.l.b16 %v688
    %v721 = vunpack.c.l.b16 %v689
    %v722 = vunpack.c.l.b16 %v690
    %v723 = vunpack.c.l.b16 %v691
    %v724 = vunpack.c.l.b16 %v692
    %v725 = vunpack.c.l.b16 %v693
    %v726 = vunpack.c.l.b16 %v694
    %v727 = vunpack.c.l.b16 %v695
    %v728 = vunpack.c.l.b16 %v696
    %v729 = vunpack.c.l.b16 %v697
    %v730 = vunpack.c.l.b16 %v698
    %v731 = vpack.c.b16 %v716, %v715
    %v732 = vpack.c.b16 %v718, %v717
    %v733 = vpack.c.b16 %v720, %v719
    %v734 = vpack.c.b16 %v722, %v721
    %v735 = vpack.c.b16 %v724, %v723
    %v736 = vpack.c.b16 %v726, %v725
    %v737 = vpack.c.b16 %v728, %v727
    %v738 = vpack.c.b16 %v730, %v729
    %747 = vmatprep.subr.bf16.mxu0 0
    %748 = vmatpush1.bf16.msra.mxu0 %v731
    %749 = vmatprep.subr.bf16.mxu0 0
    %750 = vmatpush1.bf16.msra.mxu0 %v732
    %751 = vmatprep.subr.bf16.mxu0 0
    %752 = vmatpush1.bf16.msra.mxu0 %v733
    %753 = vmatprep.subr.bf16.mxu0 0
    %754 = vmatpush1.bf16.msra.mxu0 %v734
    %755 = vmatprep.subr.bf16.mxu0 0
    %756 = vmatpush1.bf16.msra.mxu0 %v735
    %757 = vmatprep.subr.bf16.mxu0 0
    %758 = vmatpush1.bf16.msra.mxu0 %v736
    %759 = vmatprep.subr.bf16.mxu0 0
    %760 = vmatpush1.bf16.msra.mxu0 %v737
    %761 = vmatprep.subr.bf16.mxu0 0
    %762 = vmatpush1.bf16.msra.mxu0 %v738
    %763 = vmatprep.subr.bf16.mxu0 0
    %764 = vmatpush1.bf16.msra.mxu0 0
    %765 = vmatprep.subr.bf16.mxu0 0
    %766 = vmatpush1.bf16.msra.mxu0 0
    %767 = vmatprep.subr.bf16.mxu0 0
    %768 = vmatpush1.bf16.msra.mxu0 0
    %769 = vmatprep.subr.bf16.mxu0 0
    %770 = vmatpush1.bf16.msra.mxu0 0
    %771 = vmatprep.subr.bf16.mxu0 0
    %772 = vmatpush1.bf16.msra.mxu0 0
    %773 = vmatprep.subr.bf16.mxu0 0
    %774 = vmatpush1.bf16.msra.mxu0 0
    %775 = vmatprep.subr.bf16.mxu0 0
    %776 = vmatpush1.bf16.msra.mxu0 0
    %777 = vmatprep.subr.bf16.mxu0 0
    %778 = vmatpush1.bf16.msra.mxu0 0
    %779 = vmatprep.mubr.bf16.mxu0 0
    %780 = vmatmul.mubr.bf16.gmra.mrb[0].mxu0 %v675
    %v781 = vpop.f32.mrb[0].mxu0
    %v782 = vadd.f32 0.0, %v781
    %v783 = vpop.f32.mrb[0].mxu0
    %v784 = vpop.f32.mrb[0].mxu0
    %v785 = vadd.f32 0.0, %v784
    %v786 = vpop.f32.mrb[0].mxu0
    %787 = vmatprep.mubr.bf16.mxu0 0
    %788 = vmatmul.mubr.bf16.gmra.mrb[0].mxu0 %v676
    %v789 = vpop.f32.mrb[0].mxu0
    %v790 = vadd.f32 0.0, %v789
    %v791 = vpop.f32.mrb[0].mxu0
    %v792 = vpop.f32.mrb[0].mxu0
    %v793 = vadd.f32 0.0, %v792
    %v794 = vpop.f32.mrb[0].mxu0
    %795 = vmatprep.mubr.bf16.mxu0 0
    %796 = vmatmul.mubr.bf16.gmra.mrb[0].mxu0 %v677
    %v797 = vpop.f32.mrb[0].mxu0
    %v798 = vadd.f32 0.0, %v797
    %v799 = vpop.f32.mrb[0].mxu0
    %v800 = vpop.f32.mrb[0].mxu0
    %v801 = vadd.f32 0.0, %v800
    %v802 = vpop.f32.mrb[0].mxu0
    %803 = vmatprep.mubr.bf16.mxu0 0
    %804 = vmatmul.mubr.bf16.gmra.mrb[0].mxu0 %v678
    %v805 = vpop.f32.mrb[0].mxu0
    %v806 = vadd.f32 0.0, %v805
    %v807 = vpop.f32.mrb[0].mxu0
    %v808 = vpop.f32.mrb[0].mxu0
    %v809 = vadd.f32 0.0, %v808
    %v810 = vpop.f32.mrb[0].mxu0
    %811 = vmatprep.mubr.bf16.mxu0 0
    %812 = vmatmul.mubr.bf16.gmra.mrb[0].mxu0 %v679
    %v813 = vpop.f32.mrb[0].mxu0
    %v814 = vadd.f32 0.0, %v813
    %v815 = vpop.f32.mrb[0].mxu0
    %v816 = vpop.f32.mrb[0].mxu0
    %v817 = vadd.f32 0.0, %v816
    %v818 = vpop.f32.mrb[0].mxu0
    %819 = vmatprep.mubr.bf16.mxu0 0
    %820 = vmatmul.mubr.bf16.gmra.mrb[0].mxu0 %v680
    %v821 = vpop.f32.mrb[0].mxu0
    %v822 = vadd.f32 0.0, %v821
    %v823 = vpop.f32.mrb[0].mxu0
    %v824 = vpop.f32.mrb[0].mxu0
    %v825 = vadd.f32 0.0, %v824
    %v826 = vpop.f32.mrb[0].mxu0
    %827 = vmatprep.mubr.bf16.mxu0 0
    %828 = vmatmul.mubr.bf16.gmra.mrb[0].mxu0 %v681
    %v829 = vpop.f32.mrb[0].mxu0
    %v830 = vadd.f32 0.0, %v829
    %v831 = vpop.f32.mrb[0].mxu0
    %v832 = vpop.f32.mrb[0].mxu0
    %v833 = vadd.f32 0.0, %v832
    %v834 = vpop.f32.mrb[0].mxu0
    %835 = vmatprep.mubr.bf16.mxu0 0
    %836 = vmatmul.mubr.bf16.gmra.mrb[0].mxu0 %v682
    %v837 = vpop.f32.mrb[0].mxu0
    %v838 = vadd.f32 0.0, %v837
    %v839 = vpop.f32.mrb[0].mxu0
    %v840 = vpop.f32.mrb[0].mxu0
    %v841 = vadd.f32 0.0, %v840
    %v842 = vpop.f32.mrb[0].mxu0
    %843 = vdwg.mxu0
    %v860 = vunpack.c.l.b16 %v431
    %v861 = vunpack.c.l.b16 %v432
    %v862 = vunpack.c.l.b16 %v433
    %v863 = vunpack.c.l.b16 %v434
    %v864 = vunpack.c.l.b16 %v435
    %v865 = vunpack.c.l.b16 %v436
    %v866 = vunpack.c.l.b16 %v437
    %v867 = vunpack.c.l.b16 %v438
    %v868 = vunpack.c.l.b16 %v439
    %v869 = vunpack.c.l.b16 %v440
    %v870 = vunpack.c.l.b16 %v441
    %v871 = vunpack.c.l.b16 %v442
    %v872 = vunpack.c.l.b16 %v443
    %v873 = vunpack.c.l.b16 %v444
    %v874 = vunpack.c.l.b16 %v445
    %v875 = vunpack.c.l.b16 %v446
    %v876 = vpack.c.b16 %v861, %v860
    %v877 = vpack.c.b16 %v863, %v862
    %v878 = vpack.c.b16 %v865, %v864
    %v879 = vpack.c.b16 %v867, %v866
    %v880 = vpack.c.b16 %v869, %v868
    %v881 = vpack.c.b16 %v871, %v870
    %v882 = vpack.c.b16 %v873, %v872
    %v883 = vpack.c.b16 %v875, %v874
    %892 = vmatprep.subr.bf16.mxu0 0
    %893 = vmatpush1.bf16.msra.mxu0 %v876
    %894 = vmatprep.subr.bf16.mxu0 0
    %895 = vmatpush1.bf16.msra.mxu0 %v877
    %896 = vmatprep.subr.bf16.mxu0 0
    %897 = vmatpush1.bf16.msra.mxu0 %v878
    %898 = vmatprep.subr.bf16.mxu0 0
    %899 = vmatpush1.bf16.msra.mxu0 %v879
    %900 = vmatprep.subr.bf16.mxu0 0
    %901 = vmatpush1.bf16.msra.mxu0 %v880
    %902 = vmatprep.subr.bf16.mxu0 0
    %903 = vmatpush1.bf16.msra.mxu0 %v881
    %904 = vmatprep.subr.bf16.mxu0 0
    %905 = vmatpush1.bf16.msra.mxu0 %v882
    %906 = vmatprep.subr.bf16.mxu0 0
    %907 = vmatpush1.bf16.msra.mxu0 %v883
    %908 = vmatprep.subr.bf16.mxu0 0
    %909 = vmatpush1.bf16.msra.mxu0 0
    %910 = vmatprep.subr.bf16.mxu0 0
    %911 = vmatpush1.bf16.msra.mxu0 0
    %912 = vmatprep.subr.bf16.mxu0 0
    %913 = vmatpush1.bf16.msra.mxu0 0
    %914 = vmatprep.subr.bf16.mxu0 0
    %915 = vmatpush1.bf16.msra.mxu0 0
    %916 = vmatprep.subr.bf16.mxu0 0
    %917 = vmatpush1.bf16.msra.mxu0 0
    %918 = vmatprep.subr.bf16.mxu0 0
    %919 = vmatpush1.bf16.msra.mxu0 0
    %920 = vmatprep.subr.bf16.mxu0 0
    %921 = vmatpush1.bf16.msra.mxu0 0
    %922 = vmatprep.subr.bf16.mxu0 0
    %923 = vmatpush1.bf16.msra.mxu0 0
    %924 = vmatprep.mubr.bf16.mxu0 0
    %925 = vmatmul.mubr.bf16.gmra.mrb[0].mxu0 %v423
    %v926 = vpop.f32.mrb[0].mxu0
    %v927 = vadd.f32 %v782, %v926
    %v928 = vpop.f32.mrb[0].mxu0
    %v929 = vpop.f32.mrb[0].mxu0
    %v930 = vadd.f32 %v785, %v929
    %v931 = vpop.f32.mrb[0].mxu0
    %932 = vmatprep.mubr.bf16.mxu0 0
    %933 = vmatmul.mubr.bf16.gmra.mrb[0].mxu0 %v424
    %v934 = vpop.f32.mrb[0].mxu0
    %v935 = vadd.f32 %v790, %v934
    %v936 = vpop.f32.mrb[0].mxu0
    %v937 = vpop.f32.mrb[0].mxu0
    %v938 = vadd.f32 %v793, %v937
    %v939 = vpop.f32.mrb[0].mxu0
    %940 = vmatprep.mubr.bf16.mxu0 0
    %941 = vmatmul.mubr.bf16.gmra.mrb[0].mxu0 %v425
    %v942 = vpop.f32.mrb[0].mxu0
    %v943 = vadd.f32 %v798, %v942
    %v944 = vpop.f32.mrb[0].mxu0
    %v945 = vpop.f32.mrb[0].mxu0
    %v946 = vadd.f32 %v801, %v945
    %v947 = vpop.f32.mrb[0].mxu0
    %948 = vmatprep.mubr.bf16.mxu0 0
    %949 = vmatmul.mubr.bf16.gmra.mrb[0].mxu0 %v426
    %v950 = vpop.f32.mrb[0].mxu0
    %v951 = vadd.f32 %v806, %v950
    %v952 = vpop.f32.mrb[0].mxu0
    %v953 = vpop.f32.mrb[0].mxu0
    %v954 = vadd.f32 %v809, %v953
    %v955 = vpop.f32.mrb[0].mxu0
    %956 = vmatprep.mubr.bf16.mxu0 0
    %957 = vmatmul.mubr.bf16.gmra.mrb[0].mxu0 %v427
    %v958 = vpop.f32.mrb[0].mxu0
    %v959 = vadd.f32 %v814, %v958
    %v960 = vpop.f32.mrb[0].mxu0
    %v961 = vpop.f32.mrb[0].mxu0
    %v962 = vadd.f32 %v817, %v961
    %v963 = vpop.f32.mrb[0].mxu0
    %964 = vmatprep.mubr.bf16.mxu0 0
    %965 = vmatmul.mubr.bf16.gmra.mrb[0].mxu0 %v428
    %v966 = vpop.f32.mrb[0].mxu0
    %v967 = vadd.f32 %v822, %v966
    %v968 = vpop.f32.mrb[0].mxu0
    %v969 = vpop.f32.mrb[0].mxu0
    %v970 = vadd.f32 %v825, %v969
    %v971 = vpop.f32.mrb[0].mxu0
    %972 = vmatprep.mubr.bf16.mxu0 0
    %973 = vmatmul.mubr.bf16.gmra.mrb[0].mxu0 %v429
    %v974 = vpop.f32.mrb[0].mxu0
    %v975 = vadd.f32 %v830, %v974
    %v976 = vpop.f32.mrb[0].mxu0
    %v977 = vpop.f32.mrb[0].mxu0
    %v978 = vadd.f32 %v833, %v977
    %v979 = vpop.f32.mrb[0].mxu0
    %980 = vmatprep.mubr.bf16.mxu0 0
    %981 = vmatmul.mubr.bf16.gmra.mrb[0].mxu0 %v430
    %v982 = vpop.f32.mrb[0].mxu0
    %v983 = vadd.f32 %v838, %v982
    %v984 = vpop.f32.mrb[0].mxu0
    %v985 = vpop.f32.mrb[0].mxu0
    %v986 = vadd.f32 %v841, %v985
    %v987 = vpop.f32.mrb[0].mxu0
    %988 = vdwg.mxu0
    %v989 = vmax.f32 %v927, 1e-20
    %v990 = vmax.f32 %v930, 1e-20
    %v991 = vmax.f32 %v935, 1e-20
    %v992 = vmax.f32 %v938, 1e-20
    %v993 = vmax.f32 %v943, 1e-20
    %v994 = vmax.f32 %v946, 1e-20
    %v995 = vmax.f32 %v951, 1e-20
    %v996 = vmax.f32 %v954, 1e-20
    %v997 = vmax.f32 %v959, 1e-20
    %v998 = vmax.f32 %v962, 1e-20
    %v999 = vmax.f32 %v967, 1e-20
    %v1000 = vmax.f32 %v970, 1e-20
    %v1001 = vmax.f32 %v975, 1e-20
    %v1002 = vmax.f32 %v978, 1e-20
    %v1003 = vmax.f32 %v983, 1e-20
    %v1004 = vmax.f32 %v986, 1e-20
    %v1005 = vrcp.pop %v989
    %v1006 = vrcp.pop %v990
    %v1007 = vrcp.pop %v991
    %v1008 = vrcp.pop %v992
    %v1009 = vrcp.pop %v993
    %v1010 = vrcp.pop %v994
    %v1011 = vrcp.pop %v995
    %v1012 = vrcp.pop %v996
    %v1013 = vrcp.pop %v997
    %v1014 = vrcp.pop %v998
    %v1015 = vrcp.pop %v999
    %v1016 = vrcp.pop %v1000
    %v1017 = vrcp.pop %v1001
    %v1018 = vrcp.pop %v1002
    %v1019 = vrcp.pop %v1003
    %v1020 = vrcp.pop %v1004
    %v1021 = vlaneseq
    %v1022 = vand.u32 %v1021, 127
    %vm1023 = vcmp.ge.s32.totalorder %v1022, 64
    %v1024 = vsel %vm1023, 1, 0
    %vm1025 = vcmp.eq.s32.totalorder %v1024, 1
    %1027 = vset.pattern.permute.xlu0 96
    %1028 = vperm.xlu0 %1027, %v1005
    %v1029 = vpop.permute.xlu0 %1028
    %1032 = vset.pattern.permute.xlu0 96
    %1033 = vperm.xlu0 %1032, %v1006
    %v1034 = vpop.permute.xlu0 %1033
    %1037 = vset.pattern.permute.xlu0 96
    %1038 = vperm.xlu0 %1037, %v1007
    %v1039 = vpop.permute.xlu0 %1038
    %1042 = vset.pattern.permute.xlu0 96
    %1043 = vperm.xlu0 %1042, %v1008
    %v1044 = vpop.permute.xlu0 %1043
    %1047 = vset.pattern.permute.xlu0 96
    %1048 = vperm.xlu0 %1047, %v1009
    %v1049 = vpop.permute.xlu0 %1048
    %1052 = vset.pattern.permute.xlu0 96
    %1053 = vperm.xlu0 %1052, %v1010
    %v1054 = vpop.permute.xlu0 %1053
    %1057 = vset.pattern.permute.xlu0 96
    %1058 = vperm.xlu0 %1057, %v1011
    %v1059 = vpop.permute.xlu0 %1058
    %1062 = vset.pattern.permute.xlu0 96
    %1063 = vperm.xlu0 %1062, %v1012
    %v1064 = vpop.permute.xlu0 %1063
    %1067 = vset.pattern.permute.xlu0 96
    %1068 = vperm.xlu0 %1067, %v1013
    %v1069 = vpop.permute.xlu0 %1068
    %1072 = vset.pattern.permute.xlu0 96
    %1073 = vperm.xlu0 %1072, %v1014
    %v1074 = vpop.permute.xlu0 %1073
    %1077 = vset.pattern.permute.xlu0 96
    %1078 = vperm.xlu0 %1077, %v1015
    %v1079 = vpop.permute.xlu0 %1078
    %1082 = vset.pattern.permute.xlu0 96
    %1083 = vperm.xlu0 %1082, %v1016
    %v1084 = vpop.permute.xlu0 %1083
    %1087 = vset.pattern.permute.xlu0 96
    %1088 = vperm.xlu0 %1087, %v1017
    %v1089 = vpop.permute.xlu0 %1088
    %1092 = vset.pattern.permute.xlu0 96
    %1093 = vperm.xlu0 %1092, %v1018
    %v1094 = vpop.permute.xlu0 %1093
    %1097 = vset.pattern.permute.xlu0 96
    %1098 = vperm.xlu0 %1097, %v1019
    %v1099 = vpop.permute.xlu0 %1098
    %1102 = vset.pattern.permute.xlu0 96
    %1103 = vperm.xlu0 %1102, %v1020
    %v1104 = vpop.permute.xlu0 %1103
    %1106 = vset.pattern.permute.xlu0 32
    %1107 = vperm.xlu0 %1106, %v1005
    %v1108 = vpop.permute.xlu0 %1107
    %1110 = vset.pattern.permute.xlu0 32
    %1111 = vperm.xlu0 %1110, %v1006
    %v1112 = vpop.permute.xlu0 %1111
    %1114 = vset.pattern.permute.xlu0 32
    %1115 = vperm.xlu0 %1114, %v1007
    %v1116 = vpop.permute.xlu0 %1115
    %1118 = vset.pattern.permute.xlu0 32
    %1119 = vperm.xlu0 %1118, %v1008
    %v1120 = vpop.permute.xlu0 %1119
    %1122 = vset.pattern.permute.xlu0 32
    %1123 = vperm.xlu0 %1122, %v1009
    %v1124 = vpop.permute.xlu0 %1123
    %1126 = vset.pattern.permute.xlu0 32
    %1127 = vperm.xlu0 %1126, %v1010
    %v1128 = vpop.permute.xlu0 %1127
    %1130 = vset.pattern.permute.xlu0 32
    %1131 = vperm.xlu0 %1130, %v1011
    %v1132 = vpop.permute.xlu0 %1131
    %1134 = vset.pattern.permute.xlu0 32
    %1135 = vperm.xlu0 %1134, %v1012
    %v1136 = vpop.permute.xlu0 %1135
    %1138 = vset.pattern.permute.xlu0 32
    %1139 = vperm.xlu0 %1138, %v1013
    %v1140 = vpop.permute.xlu0 %1139
    %1142 = vset.pattern.permute.xlu0 32
    %1143 = vperm.xlu0 %1142, %v1014
    %v1144 = vpop.permute.xlu0 %1143
    %1146 = vset.pattern.permute.xlu0 32
    %1147 = vperm.xlu0 %1146, %v1015
    %v1148 = vpop.permute.xlu0 %1147
    %1150 = vset.pattern.permute.xlu0 32
    %1151 = vperm.xlu0 %1150, %v1016
    %v1152 = vpop.permute.xlu0 %1151
    %1154 = vset.pattern.permute.xlu0 32
    %1155 = vperm.xlu0 %1154, %v1017
    %v1156 = vpop.permute.xlu0 %1155
    %1158 = vset.pattern.permute.xlu0 32
    %1159 = vperm.xlu0 %1158, %v1018
    %v1160 = vpop.permute.xlu0 %1159
    %1162 = vset.pattern.permute.xlu0 32
    %1163 = vperm.xlu0 %1162, %v1019
    %v1164 = vpop.permute.xlu0 %1163
    %1166 = vset.pattern.permute.xlu0 32
    %1167 = vperm.xlu0 %1166, %v1020
    %v1168 = vpop.permute.xlu0 %1167
    %v1170 = vsel %vm1025, %v1029, %v1108
    %v1171 = vsel %vm1025, %v1034, %v1112
    %v1172 = vsel %vm1025, %v1039, %v1116
    %v1173 = vsel %vm1025, %v1044, %v1120
    %v1174 = vsel %vm1025, %v1049, %v1124
    %v1175 = vsel %vm1025, %v1054, %v1128
    %v1176 = vsel %vm1025, %v1059, %v1132
    %v1177 = vsel %vm1025, %v1064, %v1136
    %v1178 = vsel %vm1025, %v1069, %v1140
    %v1179 = vsel %vm1025, %v1074, %v1144
    %v1180 = vsel %vm1025, %v1079, %v1148
    %v1181 = vsel %vm1025, %v1084, %v1152
    %v1182 = vsel %vm1025, %v1089, %v1156
    %v1183 = vsel %vm1025, %v1094, %v1160
    %v1184 = vsel %vm1025, %v1099, %v1164
    %v1185 = vsel %vm1025, %v1104, %v1168
    %v1186 = vmul.f32 %v927, %v1170
    %v1187 = vmul.f32 %v930, %v1171
    %v1188 = vmul.f32 %v935, %v1172
    %v1189 = vmul.f32 %v938, %v1173
    %v1190 = vmul.f32 %v943, %v1174
    %v1191 = vmul.f32 %v946, %v1175
    %v1192 = vmul.f32 %v951, %v1176
    %v1193 = vmul.f32 %v954, %v1177
    %v1194 = vmul.f32 %v959, %v1178
    %v1195 = vmul.f32 %v962, %v1179
    %v1196 = vmul.f32 %v967, %v1180
    %v1197 = vmul.f32 %v970, %v1181
    %v1198 = vmul.f32 %v975, %v1182
    %v1199 = vmul.f32 %v978, %v1183
    %v1200 = vmul.f32 %v983, %v1184
    %v1201 = vmul.f32 %v986, %v1185
    %vm1202 = vcmp.eq.s32.totalorder %v1022, 32
    %vm1203 = vcmp.eq.s32.totalorder %v1022, 96
    %vm1204 = vmor %vm1202, %vm1203
    %v1205 = vsel %vm1204, 1, 0
    %vm1206 = vcmp.eq.s32.totalorder %v1205, 1
    %v1207 = vsel %vm1206, 0.0, %v1186
    %v1208 = vsel %vm1206, 0.0, %v1187
    %v1209 = vsel %vm1206, 0.0, %v1188
    %v1210 = vsel %vm1206, 0.0, %v1189
    %v1211 = vsel %vm1206, 0.0, %v1190
    %v1212 = vsel %vm1206, 0.0, %v1191
    %v1213 = vsel %vm1206, 0.0, %v1192
    %v1214 = vsel %vm1206, 0.0, %v1193
    %v1215 = vsel %vm1206, 0.0, %v1194
    %v1216 = vsel %vm1206, 0.0, %v1195
    %v1217 = vsel %vm1206, 0.0, %v1196
    %v1218 = vsel %vm1206, 0.0, %v1197
    %v1219 = vsel %vm1206, 0.0, %v1198
    %v1220 = vsel %vm1206, 0.0, %v1199
    %v1221 = vsel %vm1206, 0.0, %v1200
    %v1222 = vsel %vm1206, 0.0, %v1201
    %v1223 = vld [vmem:[%s4] sm:$0x1]
    %v1225 = vlaneseq
    %v1226 = vshrl.u32 %v1225, 7
    %v1227 = vsub.s32 0, %v1226
    %v1228 = vrot.slane %v1223, %v1227
    %v1230 = vadd.f32 %v1207, %v1228
    %v1231 = vadd.f32 %v1208, %v1228
    %v1232 = vadd.f32 %v1209, %v1228
    %v1233 = vadd.f32 %v1210, %v1228
    %v1234 = vadd.f32 %v1211, %v1228
    %v1235 = vadd.f32 %v1212, %v1228
    %v1236 = vadd.f32 %v1213, %v1228
    %v1237 = vadd.f32 %v1214, %v1228
    %v1238 = vadd.f32 %v1215, %v1228
    %v1239 = vadd.f32 %v1216, %v1228
    %v1240 = vadd.f32 %v1217, %v1228
    %v1241 = vadd.f32 %v1218, %v1228
    %v1242 = vadd.f32 %v1219, %v1228
    %v1243 = vadd.f32 %v1220, %v1228
    %v1244 = vadd.f32 %v1221, %v1228
    %v1245 = vadd.f32 %v1222, %v1228
    %v1246 = vmax.f32 %v1230, 0.0
    %v1247 = vmax.f32 %v1231, 0.0
    %v1248 = vmax.f32 %v1232, 0.0
    %v1249 = vmax.f32 %v1233, 0.0
    %v1250 = vmax.f32 %v1234, 0.0
    %v1251 = vmax.f32 %v1235, 0.0
    %v1252 = vmax.f32 %v1236, 0.0
    %v1253 = vmax.f32 %v1237, 0.0
    %v1254 = vmax.f32 %v1238, 0.0
    %v1255 = vmax.f32 %v1239, 0.0
    %v1256 = vmax.f32 %v1240, 0.0
    %v1257 = vmax.f32 %v1241, 0.0
    %v1258 = vmax.f32 %v1242, 0.0
    %v1259 = vmax.f32 %v1243, 0.0
    %v1260 = vmax.f32 %v1244, 0.0
    %v1261 = vmax.f32 %v1245, 0.0
    %v1262 = vpack.c.bf16 %v1247, %v1246
    %v1263 = vpack.c.bf16 %v1249, %v1248
    %v1264 = vpack.c.bf16 %v1251, %v1250
    %v1265 = vpack.c.bf16 %v1253, %v1252
    %v1266 = vpack.c.bf16 %v1255, %v1254
    %v1267 = vpack.c.bf16 %v1257, %v1256
    %v1268 = vpack.c.bf16 %v1259, %v1258
    %v1269 = vpack.c.bf16 %v1261, %v1260
    %v1278 = vunpack.c.l.b16 %v1262
    %v1279 = vunpack.c.h.b16 %v1262
    %v1280 = vunpack.c.l.b16 %v1263
    %v1281 = vunpack.c.h.b16 %v1263
    %v1282 = vunpack.c.l.b16 %v1264
    %v1283 = vunpack.c.h.b16 %v1264
    %v1284 = vunpack.c.l.b16 %v1265
    %v1285 = vunpack.c.h.b16 %v1265
    %v1286 = vunpack.c.l.b16 %v1266
    %v1287 = vunpack.c.h.b16 %v1266
    %v1288 = vunpack.c.l.b16 %v1267
    %v1289 = vunpack.c.h.b16 %v1267
    %v1290 = vunpack.c.l.b16 %v1268
    %v1291 = vunpack.c.h.b16 %v1268
    %v1292 = vunpack.c.l.b16 %v1269
    %v1293 = vunpack.c.h.b16 %v1269
    %v1294 = vpack.c.b16 %v1278, %v1278
    %v1295 = vpack.c.b16 %v1279, %v1279
    %v1296 = vpack.c.b16 %v1280, %v1280
    %v1297 = vpack.c.b16 %v1281, %v1281
    %v1298 = vpack.c.b16 %v1282, %v1282
    %v1299 = vpack.c.b16 %v1283, %v1283
    %v1300 = vpack.c.b16 %v1284, %v1284
    %v1301 = vpack.c.b16 %v1285, %v1285
    %v1302 = vpack.c.b16 %v1286, %v1286
    %v1303 = vpack.c.b16 %v1287, %v1287
    %v1304 = vpack.c.b16 %v1288, %v1288
    %v1305 = vpack.c.b16 %v1289, %v1289
    %v1306 = vpack.c.b16 %v1290, %v1290
    %v1307 = vpack.c.b16 %v1291, %v1291
    %v1308 = vpack.c.b16 %v1292, %v1292
    %v1309 = vpack.c.b16 %v1293, %v1293
    %1326 = vst [vmem:[#allocation5] sm:$0xf] %v1294
    %1327 = vst [vmem:[#allocation5 + $0x4] sm:$0xf] %v1295
    %1328 = vst [vmem:[#allocation5 + $0x8] sm:$0xf] %v1296
    %1329 = vst [vmem:[#allocation5 + $0xc] sm:$0xf] %v1297
    %1330 = vst [vmem:[#allocation5 + $0x10] sm:$0xf] %v1298
    %1331 = vst [vmem:[#allocation5 + $0x14] sm:$0xf] %v1299
    %1332 = vst [vmem:[#allocation5 + $0x18] sm:$0xf] %v1300
    %1333 = vst [vmem:[#allocation5 + $0x1c] sm:$0xf] %v1301
    %1334 = vst [vmem:[#allocation5 + $0x20] sm:$0xf] %v1302
    %1335 = vst [vmem:[#allocation5 + $0x24] sm:$0xf] %v1303
    %1336 = vst [vmem:[#allocation5 + $0x28] sm:$0xf] %v1304
    %1337 = vst [vmem:[#allocation5 + $0x2c] sm:$0xf] %v1305
    %1338 = vst [vmem:[#allocation5 + $0x30] sm:$0xf] %v1306
    %1339 = vst [vmem:[#allocation5 + $0x34] sm:$0xf] %v1307
    %1340 = vst [vmem:[#allocation5 + $0x38] sm:$0xf] %v1308
    %1341 = vst [vmem:[#allocation5 + $0x3c] sm:$0xf] %v1309
    // Predicated region
    $region26: #{tpu_custom_call.1} parent=1 // pred_check
      _
    $region27: #{tpu_custom_call.1} parent=1 // pred_check_branch
      %1343 = sbr.rel (0) target = $region29
    $region28: #{tpu_custom_call.1} parent=1 // pred_region
      %s1345 = ssub.s32 1024, 1024
      %1346 = vsyncadd [#allocation4], %s1345
      %s1347 = sshll.u32 [#allocation5], 4
      %s1348 = int_to_ptr.vmem [resolvable:$true] %s1347
      %1353 = dma.vmem_to_hbm [thread:$0]  %s1348, 1024, %s5, [#allocation4], 64, 64, 4
    $region29: #{tpu_custom_call.1} parent=1 // pred_fallthru
      _
    // Predicated region
    $region30: #{tpu_custom_call.1} parent=1 // pred_check
      _
    $region31: #{tpu_custom_call.1} parent=1 // pred_check_branch
      %1355 = sbr.rel (0) target = $region33
    $region32: #{tpu_custom_call.1} parent=1 // pred_region
      %1356 = dma.done [#allocation4], 1024
    $region33: #{tpu_custom_call.1} parent=1 // pred_fallthru
      _
    %1357 = vsyncpa [#allocation3], 1
    %1358 = vsyncpa [#allocation4], 1

</llo_original>
